<compile_context>
chip_gen: v5e
topology: v5e:2x2
jax: 0.10.0
libtpu: 0.0.40
codegen_flags: <defaults>
</compile_context>

<pallas_src>
import functools

import jax
import jax.numpy as jnp
import numpy as np
from jax.experimental import pallas as pl
from jax.experimental.pallas import tpu as pltpu


def _round_up(x: int, m: int) -> int:
    return ((x + m - 1) // m) * m


# ----------------------------- Pallas kernel --------------------------------

def _gather_kernel(ids_ref, w_hbm, o_ref, rows_vmem, copy_sem, *, rows_per_step):
    """Gather `rows_per_step` rows of `w_hbm` (HBM) into one (R, D) output block.

    ids_ref:   scalar-prefetched (SMEM) global row ids, shape (b_pad,)
    w_hbm:     full embedding table, left in HBM (memory_space=pl.ANY)
    o_ref:     (R, D) output block in VMEM
    rows_vmem: (R, D) VMEM scratch gather buffer
    copy_sem:  single DMA semaphore shared by all R row copies
    """
    base = pl.program_id(0) * rows_per_step

    # Issue R independent row DMAs (HBM -> VMEM scratch). All signal `copy_sem`.
    @pl.loop(0, rows_per_step)
    def _(r):
        row = ids_ref[base + r]
        pltpu.make_async_copy(
            w_hbm.at[pl.ds(row, 1), :],       # (1, D) source row in HBM
            rows_vmem.at[pl.ds(r, 1), :],     # (1, D) destination row in VMEM
            copy_sem,
        ).start()

    # DMA semaphores count bytes: one aggregate wait sized to R rows covers all
    # R row copies issued above.
    pltpu.make_async_copy(
        w_hbm.at[pl.ds(0, rows_per_step), :], rows_vmem, copy_sem
    ).wait()

    # Single sublane/lane-dense (R, D) store into the pipelined output block.
    o_ref[...] = rows_vmem[...]


def gather_rows(weight: jax.Array, ids: jax.Array, *, rows_per_step: int = 128) -> jax.Array:
    """out[i, :] = weight[ids[i], :] via a batched manual-DMA Pallas gather."""
    n_rows, dim = weight.shape
    (b,) = ids.shape

    # Clamp ids so an untrusted index can never drive an out-of-bounds HBM DMA.
    ids = jnp.clip(ids.astype(jnp.int32), 0, n_rows - 1)

    # Rows gathered per grid step: multiple of 8 for sublane-dense output blocks.
    r = min(rows_per_step, _round_up(b, 8))
    r = max(_round_up(r, 8), 8)
    b_pad = _round_up(b, r)
    if b_pad != b:
        # Pad with a valid row id (0); padded output rows are sliced off below.
        ids = jnp.concatenate([ids, jnp.zeros((b_pad - b,), jnp.int32)])

    kernel = functools.partial(_gather_kernel, rows_per_step=r)

    out = pl.pallas_call(
        kernel,
        grid_spec=pltpu.PrefetchScalarGridSpec(
            num_scalar_prefetch=1,
            grid=(b_pad // r,),
            in_specs=[
                # Embedding table stays in HBM; rows are DMA'd manually.
                pl.BlockSpec(memory_space=pl.ANY),
            ],
            out_specs=pl.BlockSpec((r, dim), lambda i, ids_ref: (i, 0)),
            scratch_shapes=[
                pltpu.VMEM((r, dim), weight.dtype),   # gather staging buffer
                pltpu.SemaphoreType.DMA(()),          # shared DMA semaphore
            ],
        ),
        out_shape=jax.ShapeDtypeStruct((b_pad, dim), weight.dtype),
        compiler_params=pltpu.CompilerParams(
            # Grid steps are independent -> shard across TensorCores on v7x.
            dimension_semantics=("parallel",),
        ),
    )(ids, weight)

    return out[:b] if b_pad != b else out


# --------------------------- Module equivalent -------------------------------

class NodeIDEmbeddingPallas:
    """JAX/Pallas equivalent of moge NodeIDEmbedding."""

    def __init__(self, node_types, num_nodes_dict, embedding_dim, key):
        self.node_types = list(node_types)
        self.num_nodes_dict = dict(num_nodes_dict)
        count = 0
        self.start, self.end = {}, {}
        for node_type in self.node_types:
            self.start[node_type] = count
            count += self.num_nodes_dict[node_type]
            self.end[node_type] = count
        self.total_nodes = count
        self.embedding_dim = embedding_dim
        # torch.nn.Embedding default init: N(0, 1). Deterministic synthetic init here.
        self.weight = jax.random.normal(key, (count, embedding_dim), dtype=jnp.float32)

    def forward(self, node_type: str, batch=None):
        s, e = self.start[node_type], self.end[node_type]
        if batch is None:
            # Contiguous id range [s, e): a plain static slice streams at HBM
            # roofline; no per-row gather kernel needed for this branch.
            return self.weight[s:e]
        # emb[batch] == weight[start + batch]; offset added as glue in JAX,
        # data-dependent row gather done by the Pallas kernel.
        ids = batch.astype(jnp.int32) + jnp.int32(s)
        return gather_rows(self.weight, ids)


# --------------------------------- main --------------------------------------

if __name__ == "__main__":
    key = jax.random.PRNGKey(0)
    k_w, k_b1, k_b2 = jax.random.split(key, 3)

    node_types = ["paper", "author"]
    num_nodes_dict = {"paper": 64, "author": 48}
    embedding_dim = 128  # lane-dense last dim

    mod = NodeIDEmbeddingPallas(node_types, num_nodes_dict, embedding_dim, k_w)
    w_np = np.asarray(mod.weight)

    # Case 1: batch=None -> contiguous slice of the "author" block (XLA slice path).
    out_full = jax.block_until_ready(mod.forward("author", batch=None))
    ref_full = w_np[mod.start["author"]:mod.end["author"]]
    assert out_full.shape == (num_nodes_dict["author"], embedding_dim)
    np.testing.assert_allclose(np.asarray(out_full), ref_full)

    # Case 2: Pallas gather, single grid step with row padding (b=37 -> R=40).
    batch1 = jax.random.randint(k_b1, (37,), 0, num_nodes_dict["paper"], dtype=jnp.int32)
    out1 = jax.block_until_ready(mod.forward("paper", batch=batch1))
    ref1 = w_np[mod.start["paper"]:mod.end["paper"]][np.asarray(batch1)]
    assert out1.shape == (37, embedding_dim)
    np.testing.assert_allclose(np.asarray(out1), ref1)

    # Case 3: Pallas gather, multiple grid steps (b=300 -> R=128, grid=(3,)).
    batch2 = jax.random.randint(k_b2, (300,), 0, num_nodes_dict["author"], dtype=jnp.int32)
    out2 = jax.block_until_ready(mod.forward("author", batch=batch2))
    ref2 = w_np[mod.start["author"]:mod.end["author"]][np.asarray(batch2)]
    assert out2.shape == (300, embedding_dim)
    np.testing.assert_allclose(np.asarray(out2), ref2)

    print("KERNEL_OK")
</pallas_src>

<mosaic_0001>
module attributes {stable_mosaic.version = 11 : i64} {
  func.func @_gather_kernel(%arg0: i32, %arg1: memref<40xi32, #tpu.memory_space<smem>>, %arg2: memref<112x128xf32, #tpu.memory_space<any>>, %arg3: memref<40x128xf32, #tpu.memory_space<vmem>>, %arg4: memref<40x128xf32, #tpu.memory_space<vmem>>, %arg5: memref<!tpu.dma_semaphore, #tpu.memory_space<semaphore_mem>>) attributes {dimension_semantics = [#tpu.dimension_semantics<parallel>], iteration_bounds = array<i64: 1>, scalar_prefetch = 1 : i64, scratch_operands = 2 : i64, tpu.core_type = #tpu.core_type<tc>, window_params = [{}, {transform_indices = @transform_1, window_bounds = array<i64: 40, 128>}]} {
    %c40_i32 = arith.constant 40 : i32
    %0 = arith.muli %arg0, %c40_i32 : i32
    %c0_i32 = arith.constant 0 : i32
    %c40_i32_0 = arith.constant 40 : i32
    %1 = arith.addi %c0_i32, %c40_i32_0 : i32
    %c1_i32 = arith.constant 1 : i32
    scf.for %arg6 = %c0_i32 to %1 step %c1_i32  : i32 {
      %c1_i32_7 = arith.constant 1 : i32
      %5 = arith.muli %arg6, %c1_i32_7 : i32
      %c0_i32_8 = arith.constant 0 : i32
      %6 = arith.addi %c0_i32_8, %5 : i32
      %7 = arith.addi %0, %6 : i32
      %8 = arith.index_cast %7 : i32 to index
      %9 = memref.load %arg1[%8] : memref<40xi32, #tpu.memory_space<smem>>
      %c0_i32_9 = arith.constant 0 : i32
      %10 = tpu.memref_slice %arg2[%9, %c0_i32_9] : memref<112x128xf32, #tpu.memory_space<any>> -> memref<1x128xf32, #tpu.memory_space<any>>
      %c0_i32_10 = arith.constant 0 : i32
      %11 = tpu.memref_slice %arg4[%6, %c0_i32_10] : memref<40x128xf32, #tpu.memory_space<vmem>> -> memref<1x128xf32, #tpu.memory_space<vmem>>
      tpu.enqueue_dma source(%10 : memref<1x128xf32, #tpu.memory_space<any>>) target(%11 : memref<1x128xf32, #tpu.memory_space<vmem>>) target_semaphore(%arg5 : memref<!tpu.dma_semaphore, #tpu.memory_space<semaphore_mem>>)
    }
    %c40_i32_1 = arith.constant 40 : i32
    %c0_i32_2 = arith.constant 0 : i32
    %c0_i32_3 = arith.constant 0 : i32
    %2 = tpu.memref_slice %arg2[%c0_i32_2, %c0_i32_3] : memref<112x128xf32, #tpu.memory_space<any>> -> memref<40x128xf32, #tpu.memory_space<any>>
    tpu.wait_dma2 semaphore(%arg5 : memref<!tpu.dma_semaphore, #tpu.memory_space<semaphore_mem>>) src(%2 : memref<40x128xf32, #tpu.memory_space<any>>) dst(%arg4 : memref<40x128xf32, #tpu.memory_space<vmem>>)
    %c0 = arith.constant 0 : index
    %c0_4 = arith.constant 0 : index
    %3 = vector.load %arg4[%c0, %c0_4] : memref<40x128xf32, #tpu.memory_space<vmem>>, vector<40x128xf32>
    %c0_5 = arith.constant 0 : index
    %c0_6 = arith.constant 0 : index
    %4 = vector.load %arg3[%c0_5, %c0_6] : memref<40x128xf32, #tpu.memory_space<vmem>>, vector<40x128xf32>
    tpu.vector_store %arg3[%c0_5, %c0_6], %3 {strides = array<i32>} : memref<40x128xf32, #tpu.memory_space<vmem>>, vector<40x128xf32>,
    return
  }
  func.func @transform_1(%arg0: i32, %arg1: memref<40xi32, #tpu.memory_space<smem>>) -> (i32, i32) {
    %c0_i32 = arith.constant 0 : i32
    %c0_i32_0 = arith.constant 0 : i32
    return %arg0, %c0_i32 : i32, i32
  }
}

</mosaic_0001>

<llo_original>
// kernel: tpu_custom_call.1
$region0: #{tpu_custom_call.1}
  #allocation0 [shape = 'u32[]', space=smem, size = 0x4, offset = 0x4, fixed_abs, tag = 'smem constant byte address 0x4 - core index']
  #allocation1 [shape = 'u32[72,128]{1,0:T(1,128)}', space=vmem, size = 0x9000, scoped, tag = 'internal scratch']
  #allocation2 [shape = 'f32[40,128]{1,0:T(8,128)}', space=vmem, size = 0x5000, scoped, tag = 'scratch operand']
  #allocation3 [shape = 's32[1]{0}', space=sflag, size = 0x4, scoped, tag = 'scratch operand']
  #allocation4 [shape = 's32[1]{0}', space=sflag, size = 0x4, scoped, tag = 'scoped memory for tpu_custom_call.1']
  #allocation5 [shape = 'u8[512]{0}', space=smem, size = 0x200, scoped, tag = 'prefetched SMEM operand 0']
  #allocation8 [shape = 's32[]', space=sflag, size = 0x4, offset = 0, fixed_abs, tag = 'sflag constant byte address 0x0 - dummy sync flag']
  #allocation9 [shape = 's32[]', space=sflag, size = 0x4, offset = 0, fixed_abs, tag = 'sflag constant byte address 0x0 - dummy sync flag']
  #allocation10 [shape = 'u32[]', space=smem, size = 0x4, offset = 0x44, fixed_abs, tag = 'smem constant byte address 0x44 - assertion arg 0']
  #allocation11 [shape = 'u32[]', space=smem, size = 0x4, offset = 0x48, fixed_abs, tag = 'smem constant byte address 0x48 - assertion arg 1']
  %s0 = inlined_call_operand.hbm [shape: s32[40], index: 0, kind: input, shape index: {}]
  %s1 = inlined_call_operand.hbm [shape: f32[112,128], index: 1, kind: input, shape index: {}]
  %s2 = inlined_call_operand.hbm [shape: f32[40,128], index: 2, kind: output, shape index: {}]
  %s3 = sld [smem:[#allocation0]]
  $region21: #{tpu_custom_call.1} parent=0
    _
  %s5 = ssub.s32 1, %s3
  %s6 = scalar_select 0, %s5, %s3
  %s8 = sshll.u32 %s0, 4
  %s9 = int_to_ptr.hbm [resolvable:$true] %s8
  %11 = dma.hbm_to_smem %s9, 16, [#allocation5], [#allocation4]
  %13 = dma.done [#allocation4], 16
  %14 = sfence
  $region1: #{tpu_custom_call.1} parent=0
    #allocation6 [shape = 'u8[20480]{0}', space=vmem, size = 0x5000, scoped, tag = 'output window, operand 0, single buffered']
    #allocation7 [shape = 's32[1]{0}', space=sflag, size = 0x4, scoped, tag = 'scoped memory for tpu_custom_call.1']
    %15 = vsyncpa [#allocation7], 0
    %s16 = smul.u32 0, 40
    loop: start=0, step=1, limit=40
    $region2: #{tpu_custom_call.1} parent=1 // loop_pre_header
      _
    $region3: #{tpu_custom_call.1} parent=1 // loop_header
      %s18 = sphi 0, %s22
      %p19 = scmp.ge.s32.totalorder %s18, 40
    $region4: #{tpu_custom_call.1} parent=1 // loop_header_branch
      %21 = sbr.rel (%p19) target = $region8
    $region5: #{tpu_custom_call.1} parent=1 // loop_body
      %s23 = sadd.s32 %s16, %s18
      %s24 = sld [smem:[#allocation5 + %s23]]
      %s25 = scalar_lea.hbm %s1, %s24
      %s26 = scalar_lea.vmem [#allocation2], %s18
      // Predicated region
      $region9: #{tpu_custom_call.1} parent=5 // pred_check
        _
      $region10: #{tpu_custom_call.1} parent=5 // pred_check_branch
        %28 = sbr.rel target = $region12
      $region11: #{tpu_custom_call.1} parent=5 // pred_region
        %29 = sst [smem:[#allocation10]] [#allocation9]
        %30 = sst [smem:[#allocation11]] [#allocation8]
      $region12: #{tpu_custom_call.1} parent=5 // pred_fallthru
        _
      %32 = shalt.err (0)
      %s34 = sshll.u32 %s25, 4
      %s35 = int_to_ptr.hbm [resolvable:$true] %s34
      %s36 = sshll.u32 %s26, 4
      %s37 = int_to_ptr.vmem [resolvable:$true] %s36
      %39 = dma.hbm_to_vmem [thread:$0]  %s35, 16, %s37, [#allocation3]
    $region6: #{tpu_custom_call.1} parent=1 // loop_footer
      %s22 = sadd.s32 1, %s18
    $region7: #{tpu_custom_call.1} parent=1 // loop_footer_branch
      %17 = sbr.rel target = $region3
    $region8: #{tpu_custom_call.1} parent=1 // loop_exit
      _
    %s40 = smul.u32 40, 1
    %s41 = sshll.u32 %s40, 4
    %42 = dma.done [#allocation3], %s41
    %v43 = vld [vmem:[#allocation2] sm:$0xff]
    %v44 = vld [vmem:[#allocation2 + $0x8] sm:$0xff]
    %v45 = vld [vmem:[#allocation2 + $0x10] sm:$0xff]
    %v46 = vld [vmem:[#allocation2 + $0x18] sm:$0xff]
    %v47 = vld [vmem:[#allocation2 + $0x20] sm:$0xff]
    %48 = vst [vmem:[#allocation6] sm:$0xff] %v43
    %49 = vst [vmem:[#allocation6 + $0x8] sm:$0xff] %v44
    %50 = vst [vmem:[#allocation6 + $0x10] sm:$0xff] %v45
    %51 = vst [vmem:[#allocation6 + $0x18] sm:$0xff] %v46
    %52 = vst [vmem:[#allocation6 + $0x20] sm:$0xff] %v47
    // Predicated region
    $region13: #{tpu_custom_call.1} parent=1 // pred_check
      _
    $region14: #{tpu_custom_call.1} parent=1 // pred_check_branch
      %54 = sbr.rel (0) target = $region16
    $region15: #{tpu_custom_call.1} parent=1 // pred_region
      %56 = vsyncadd [#allocation7], 0
      %s57 = sshll.u32 [#allocation6], 4
      %s58 = int_to_ptr.vmem [resolvable:$true] %s57
      %s59 = sshll.u32 %s2, 4
      %s60 = int_to_ptr.hbm [resolvable:$true] %s59
      %65 = dma.vmem_to_hbm [thread:$0]  %s58, 640, %s60, [#allocation7], 128, 128, 8
    $region16: #{tpu_custom_call.1} parent=1 // pred_fallthru
      _
    // Predicated region
    $region17: #{tpu_custom_call.1} parent=1 // pred_check
      _
    $region18: #{tpu_custom_call.1} parent=1 // pred_check_branch
      %67 = sbr.rel (0) target = $region20
    $region19: #{tpu_custom_call.1} parent=1 // pred_region
      %69 = dma.done [#allocation7], 640
    $region20: #{tpu_custom_call.1} parent=1 // pred_fallthru
      _
    %70 = vsyncpa [#allocation7], 1
  %71 = vsyncmov [#allocation3]
  %s72 = vpop.sfrf %71
  %p73 = scmp.eq.s32.totalorder %s72, 0
  %p74 = pneg %p73
  %76 = shalt.err (%p74)

</llo_original>
